<compile_context>
chip_gen: v5e
topology: v5e:2x2
jax: 0.10.0
libtpu: 0.0.40
codegen_flags: <defaults>
</compile_context>

<pallas_src>
import functools

import jax
import jax.numpy as jnp
from jax.experimental import pallas as pl
from jax.experimental.pallas import tpu as pltpu

_LANES = 128
_PALLAS_MIN_ELEMS = 1 << 18          # below ~1 MiB f32, fused XLA is faster


@functools.lru_cache(maxsize=1)
def _device_defaults():
    """(block_row_cap, max_partitions) per TPU generation."""
    try:
        kind = jax.devices()[0].device_kind.lower()
    except Exception:  # pragma: no cover - CPU/interpret fallback
        kind = ""
    is_v7 = "v7" in kind
    # v7x: ~3.2 TB/s HBM per TC -> bigger blocks; 2 TensorCores -> 2-way split.
    block_cap = 8192 if is_v7 else 4096
    max_parts = 2 if is_v7 else 1
    return block_cap, max_parts


def _round_up(x: int, m: int) -> int:
    return ((x + m - 1) // m) * m


def _ae_kernel(yh_ref, y_ref, out_ref, acc_ref, *,
               valid_rows, block_rows, steps, total_blocks,
               mask_needed, finalize_scalar, inv_n):
    """Accumulate sum(y_hat - y) into a single (8, 128) vreg accumulator."""
    p = pl.program_id(0)        # partition (TensorCore on v7x)
    i = pl.program_id(1)        # sequential step inside the partition
    blk = p * steps + i         # global block index

    @pl.when(i == 0)
    def _init():
        acc_ref[...] = jnp.zeros_like(acc_ref)

    # |mean(yh) - mean(y)| == |mean(yh - y)|  -> one fused reduction.
    diff = yh_ref[...].astype(jnp.float32) - y_ref[...].astype(jnp.float32)

    def _accumulate(d):
        # (block_rows, 128) -> (block_rows//8, 8, 128); the reshape is aligned
        # with the (8,128) vreg tiling (free), and the axis-0 sum is pure
        # vreg-vreg VALU adds into a single resident vreg tile.
        acc_ref[...] += d.reshape(-1, 8, _LANES).sum(axis=0)

    if mask_needed:
        # Only the single global last block holds rows past `valid_rows`
        # (Pallas block padding with unspecified values); every interior step
        # skips the iota/compare/select entirely.
        @pl.when(blk == total_blocks - 1)
        def _tail():
            row0 = blk * block_rows
            ridx = row0 + jax.lax.broadcasted_iota(jnp.int32, diff.shape, 0)
            _accumulate(jnp.where(ridx < valid_rows, diff, 0.0))

        @pl.when(blk != total_blocks - 1)
        def _body():
            _accumulate(diff)
    else:
        _accumulate(diff)

    @pl.when(i == steps - 1)
    def _finalize():
        # One cross-sublane + cross-lane reduce per partition (XLU; free slot).
        total = jnp.sum(acc_ref[...])
        if finalize_scalar:
            # Single partition: fold |.| and the 1/n scaling into the kernel.
            total = jnp.abs(total) * inv_n
        out_ref[...] = jnp.full(out_ref.shape, total, dtype=jnp.float32)


def _to_rows(x: jax.Array) -> jax.Array:
    """Flatten to a (rows, 128) view at native dtype (no wrapper-side casts)."""
    if not (jnp.issubdtype(x.dtype, jnp.floating)
            or jnp.issubdtype(x.dtype, jnp.integer)):
        x = x.astype(jnp.float32)        # e.g. bool
    flat = jnp.ravel(x)                  # free for contiguous inputs
    rem = flat.shape[0] % _LANES
    if rem:
        # TODO(synk): this pad costs one HBM copy; it only fires when the element
        # count is not a multiple of 128 (rare for NCHW images). Zeros are harmless
        # because the true element count is used for the mean.
        flat = jnp.pad(flat, (0, _LANES - rem))
    return flat.reshape(-1, _LANES)


@functools.partial(jax.jit, static_argnames=("use_pallas",))
def ae(y_hat: jax.Array, y: jax.Array, use_pallas=None) -> jax.Array:
    """Absolute Error between two channel-first images (any matching shape)."""
    assert y_hat.shape == y.shape, "y_hat and y must have identical shapes"
    n_elems = int(y_hat.size)
    if n_elems == 0:
        return jnp.float32(jnp.nan)      # torch.mean of an empty tensor is NaN

    run_pallas = use_pallas if use_pallas is not None else (n_elems >= _PALLAS_MIN_ELEMS)
    if not run_pallas:
        # Tiny inputs: a fused XLA reduction beats pallas_call launch overhead.
        d = jnp.mean(y_hat.astype(jnp.float32)) - jnp.mean(y.astype(jnp.float32))
        return jnp.abs(d)

    yh2 = _to_rows(y_hat)
    y2 = _to_rows(y)
    rows = yh2.shape[0]

    block_cap, max_parts = _device_defaults()
    block_rows = min(_round_up(rows, 8), block_cap)       # multiple of 8 always
    total_blocks = pl.cdiv(rows, block_rows)
    # 2-way split only when it divides the block count exactly (v7x only):
    # guarantees every block index is in range and at most one block is partial.
    num_parts = 2 if (max_parts == 2 and total_blocks >= 2
                      and total_blocks % 2 == 0) else 1
    steps = total_blocks // num_parts
    mask_needed = (total_blocks * block_rows) != rows
    finalize_scalar = (num_parts == 1)

    kernel = functools.partial(
        _ae_kernel,
        valid_rows=rows, block_rows=block_rows, steps=steps,
        total_blocks=total_blocks, mask_needed=mask_needed,
        finalize_scalar=finalize_scalar, inv_n=float(1.0 / n_elems))

    in_map = lambda p_, i_: (p_ * steps + i_, 0)

    partials = pl.pallas_call(
        kernel,
        out_shape=jax.ShapeDtypeStruct((num_parts, 1, _LANES), jnp.float32),
        grid_spec=pltpu.PrefetchScalarGridSpec(
            num_scalar_prefetch=0,
            grid=(num_parts, steps),
            in_specs=[
                pl.BlockSpec((block_rows, _LANES), in_map),
                pl.BlockSpec((block_rows, _LANES), in_map),
            ],
            out_specs=pl.BlockSpec((1, 1, _LANES), lambda p_, i_: (p_, 0, 0)),
            scratch_shapes=[pltpu.VMEM((8, _LANES), jnp.float32)],
        ),
        compiler_params=pltpu.CompilerParams(
            dimension_semantics=("parallel", "arbitrary"),
            vmem_limit_bytes=28 * 1024 * 1024,
        ),
    )(yh2, y2)

    # TODO(synk): reference casts to float64; TPU has no native f64, so the
    # reduction is float32 with per-lane partial accumulators instead.
    if num_parts == 1:
        return partials[0, 0, 0]         # |.|/n already applied in-kernel
    return jnp.abs(jnp.sum(partials[:, 0, 0])) * jnp.float32(1.0 / n_elems)


if __name__ == "__main__":
    key = jax.random.PRNGKey(0)
    k1, k2, k3, k4, k5, k6 = jax.random.split(key, 6)

    # Small 4D channel-first inputs, forced through the Pallas kernel.
    y_hat = jax.random.uniform(k1, (2, 4, 16, 16), dtype=jnp.float32)
    y = jax.random.uniform(k2, (2, 4, 16, 16), dtype=jnp.float32)
    score = ae(y_hat, y, use_pallas=True)
    jax.block_until_ready(score)
    ref = jnp.abs(jnp.mean(y_hat) - jnp.mean(y))
    assert jnp.allclose(score, ref, atol=1e-6), (score, ref)

    # Same small inputs through the default path (fused-XLA fast path).
    score_fast = ae(y_hat, y)
    jax.block_until_ready(score_fast)
    assert jnp.allclose(score_fast, ref, atol=1e-6), (score_fast, ref)

    # Shape with a %128 lane tail and a partial row-block (mask path).
    y_hat2 = jax.random.uniform(k3, (2, 3, 300, 300), dtype=jnp.float32)
    y2 = jax.random.uniform(k4, (2, 3, 300, 300), dtype=jnp.float32)
    score2 = ae(y_hat2, y2)
    jax.block_until_ready(score2)
    ref2 = jnp.abs(jnp.mean(y_hat2) - jnp.mean(y2))
    assert jnp.allclose(score2, ref2, atol=5e-6), (score2, ref2)

    # Larger shape: multi-block sequential path (and the 2-way split on v7x).
    y_hat3 = jax.random.uniform(k5, (4, 3, 320, 320), dtype=jnp.float32)
    y3 = jax.random.uniform(k6, (4, 3, 320, 320), dtype=jnp.float32)
    score3 = ae(y_hat3, y3)
    jax.block_until_ready(score3)
    ref3 = jnp.abs(jnp.mean(y_hat3) - jnp.mean(y3))
    assert jnp.allclose(score3, ref3, atol=5e-6), (score3, ref3)

    print("KERNEL_OK")
</pallas_src>

<mosaic_0001>
module attributes {stable_mosaic.version = 11 : i64} {
  func.func @_ae_kernel(%arg0: i32, %arg1: i32, %arg2: memref<16x128xf32, #tpu.memory_space<vmem>>, %arg3: memref<16x128xf32, #tpu.memory_space<vmem>>, %arg4: memref<1x1x128xf32, #tpu.memory_space<vmem>>, %arg5: memref<8x128xf32, #tpu.memory_space<vmem>>) attributes {dimension_semantics = [#tpu.dimension_semantics<parallel>, #tpu.dimension_semantics<arbitrary>], iteration_bounds = array<i64: 1, 1>, scalar_prefetch = 0 : i64, scratch_operands = 1 : i64, tpu.core_type = #tpu.core_type<tc>, window_params = [{transform_indices = @transform_0, window_bounds = array<i64: 16, 128>}, {transform_indices = @transform_1, window_bounds = array<i64: 16, 128>}, {transform_indices = @transform_2, window_bounds = array<i64: 1, 1, 128>}]} {
    %c0_i32 = arith.constant 0 : i32
    %0 = arith.cmpi eq, %arg1, %c0_i32 : i32
    %1 = arith.extui %0 : i1 to i32
    %c0_i32_0 = arith.constant 0 : i32
    %2 = arith.cmpi ne, %1, %c0_i32_0 : i32
    scf.if %2 {
      %cst_10 = arith.constant 0.000000e+00 : f32
      %14 = vector.broadcast %cst_10 : f32 to vector<8x128xf32>
      %c0_11 = arith.constant 0 : index
      %c0_12 = arith.constant 0 : index
      %15 = vector.load %arg5[%c0_11, %c0_12] : memref<8x128xf32, #tpu.memory_space<vmem>>, vector<8x128xf32>
      tpu.vector_store %arg5[%c0_11, %c0_12], %14 {strides = array<i32>} : memref<8x128xf32, #tpu.memory_space<vmem>>, vector<8x128xf32>,
    } else {
    }
    %c0 = arith.constant 0 : index
    %c0_1 = arith.constant 0 : index
    %3 = vector.load %arg2[%c0, %c0_1] : memref<16x128xf32, #tpu.memory_space<vmem>>, vector<16x128xf32>
    %c0_2 = arith.constant 0 : index
    %c0_3 = arith.constant 0 : index
    %4 = vector.load %arg3[%c0_2, %c0_3] : memref<16x128xf32, #tpu.memory_space<vmem>>, vector<16x128xf32>
    %5 = arith.subf %3, %4 : vector<16x128xf32>
    %c0_4 = arith.constant 0 : index
    %c0_5 = arith.constant 0 : index
    %6 = vector.load %arg5[%c0_4, %c0_5] : memref<8x128xf32, #tpu.memory_space<vmem>>, vector<8x128xf32>
    %7 = vector.shape_cast %5 : vector<16x128xf32> to vector<2x8x128xf32>
    %cst = arith.constant dense<0.000000e+00> : vector<8x128xf32>
    %8 = vector.multi_reduction <add>, %7, %cst [0] : vector<2x8x128xf32> to vector<8x128xf32>
    %9 = arith.addf %6, %8 : vector<8x128xf32>
    %c0_6 = arith.constant 0 : index
    %c0_7 = arith.constant 0 : index
    %10 = vector.load %arg5[%c0_6, %c0_7] : memref<8x128xf32, #tpu.memory_space<vmem>>, vector<8x128xf32>
    tpu.vector_store %arg5[%c0_6, %c0_7], %9 {strides = array<i32>} : memref<8x128xf32, #tpu.memory_space<vmem>>, vector<8x128xf32>,
    %c0_i32_8 = arith.constant 0 : i32
    %11 = arith.cmpi eq, %arg1, %c0_i32_8 : i32
    %12 = arith.extui %11 : i1 to i32
    %c0_i32_9 = arith.constant 0 : i32
    %13 = arith.cmpi ne, %12, %c0_i32_9 : i32
    scf.if %13 {
      %c0_10 = arith.constant 0 : index
      %c0_11 = arith.constant 0 : index
      %14 = vector.load %arg5[%c0_10, %c0_11] : memref<8x128xf32, #tpu.memory_space<vmem>>, vector<8x128xf32>
      %15 = vector.shape_cast %14 : vector<8x128xf32> to vector<1x8x128xf32>
      %cst_12 = arith.constant dense<0.000000e+00> : vector<1xf32>
      %16 = vector.multi_reduction <add>, %15, %cst_12 [1, 2] : vector<1x8x128xf32> to vector<1xf32>
      %17 = vector.shape_cast %16 : vector<1xf32> to vector<1x1x1xf32>
      %18 = vector.extract %17[0, 0, 0] : f32 from vector<1x1x1xf32>
      %19 = math.absf %18 : f32
      %cst_13 = arith.constant 4.8828125E-4 : f32
      %20 = arith.mulf %19, %cst_13 : f32
      %21 = vector.broadcast %20 : f32 to vector<1x1x128xf32>
      %c0_14 = arith.constant 0 : index
      %c0_15 = arith.constant 0 : index
      %c0_16 = arith.constant 0 : index
      %22 = vector.load %arg4[%c0_14, %c0_15, %c0_16] : memref<1x1x128xf32, #tpu.memory_space<vmem>>, vector<1x1x128xf32>
      tpu.vector_store %arg4[%c0_14, %c0_15, %c0_16], %21 {strides = array<i32>} : memref<1x1x128xf32, #tpu.memory_space<vmem>>, vector<1x1x128xf32>,
    } else {
    }
    return
  }
  func.func @transform_0(%arg0: i32, %arg1: i32) -> (i32, i32) {
    %c1_i32 = arith.constant 1 : i32
    %0 = arith.muli %arg0, %c1_i32 : i32
    %1 = arith.addi %0, %arg1 : i32
    %c0_i32 = arith.constant 0 : i32
    %c0_i32_0 = arith.constant 0 : i32
    return %1, %c0_i32 : i32, i32
  }
  func.func @transform_1(%arg0: i32, %arg1: i32) -> (i32, i32) {
    %c1_i32 = arith.constant 1 : i32
    %0 = arith.muli %arg0, %c1_i32 : i32
    %1 = arith.addi %0, %arg1 : i32
    %c0_i32 = arith.constant 0 : i32
    %c0_i32_0 = arith.constant 0 : i32
    return %1, %c0_i32 : i32, i32
  }
  func.func @transform_2(%arg0: i32, %arg1: i32) -> (i32, i32, i32) {
    %c0_i32 = arith.constant 0 : i32
    %c0_i32_0 = arith.constant 0 : i32
    %c0_i32_1 = arith.constant 0 : i32
    return %arg0, %c0_i32, %c0_i32_0 : i32, i32, i32
  }
}

</mosaic_0001>

<llo_original>
// kernel: ae.1
$region0: #{ae.1}
  #allocation0 [shape = 'u32[]', space=smem, size = 0x4, offset = 0x4, fixed_abs, tag = 'smem constant byte address 0x4 - core index']
  #allocation1 [shape = 'u32[72,128]{1,0:T(1,128)}', space=vmem, size = 0x9000, scoped, tag = 'internal scratch']
  #allocation2 [shape = 'f32[8,128]{1,0:T(8,128)}', space=vmem, size = 0x1000, scoped, tag = 'scratch operand']
  %s0 = inlined_call_operand.vmem [shape: f32[16,128], index: 0, kind: input, shape index: {}]
  %s1 = inlined_call_operand.vmem [shape: f32[16,128], index: 1, kind: input, shape index: {}]
  %s2 = inlined_call_operand.hbm [shape: f32[1,1,128], index: 2, kind: output, shape index: {}]
  %s3 = sld [smem:[#allocation0]]
  $region26: #{ae.1} parent=0
    _
  %s5 = ssub.s32 1, %s3
  %s6 = scalar_select 0, %s5, %s3
  $region1: #{ae.1} parent=0
    #allocation3 [shape = 'u8[512]{0}', space=vmem, size = 0x400, scoped, tag = 'output window, operand 0, single buffered']
    #allocation4 [shape = 's32[1]{0}', space=sflag, size = 0x4, scoped, tag = 'scoped memory for ae.1']
    %7 = vsyncpa [#allocation4], 0
    // Predicated region
    $region2: #{ae.1} parent=1 // pred_check
      _
    $region3: #{ae.1} parent=1 // pred_check_branch
      %9 = sbr.rel (0) target = $region5
    $region4: #{ae.1} parent=1 // pred_region
      %s10 = sadd.s32 0, 0
      %s11 = smul.u32 2, %s10
      %p12 = scmp.lt.s32.totalorder %s11, 1
      %s13 = scalar_select %p12, %s11, 1
      %s14 = smul.addr %s13, 8
      %s15 = scalar_lea.vmem %s0, %s14
      %s16 = sadd.s32 0, 0
      %s17 = smul.u32 2, %s16
    $region5: #{ae.1} parent=1 // pred_fallthru
      _
    // Predicated region
    $region6: #{ae.1} parent=1 // pred_check
      _
    $region7: #{ae.1} parent=1 // pred_check_branch
      %19 = sbr.rel (0) target = $region9
    $region8: #{ae.1} parent=1 // pred_region
      %s20 = sadd.s32 0, 0
      %s21 = smul.u32 2, %s20
      %p22 = scmp.lt.s32.totalorder %s21, 1
      %s23 = scalar_select %p22, %s21, 1
      %s24 = smul.addr %s23, 8
      %s25 = scalar_lea.vmem %s1, %s24
      %s26 = sadd.s32 0, 0
      %s27 = smul.u32 2, %s26
    $region9: #{ae.1} parent=1 // pred_fallthru
      _
    %s28 = sadd.s32 0, 0
    %s29 = smul.u32 2, %s28
    %p30 = scmp.lt.s32.totalorder %s29, 1
    %s31 = scalar_select %p30, %s29, 1
    %s32 = smul.addr %s31, 8
    %s33 = scalar_lea.vmem %s0, %s32
    %s34 = sadd.s32 0, 0
    %s35 = smul.u32 2, %s34
    %p36 = scmp.lt.s32.totalorder %s35, 1
    %s37 = scalar_select %p36, %s35, 1
    %s38 = smul.addr %s37, 8
    %s39 = scalar_lea.vmem %s1, %s38
    %s40 = sadd.s32 0, 0
    %s41 = smul.u32 2, %s40
    %p42 = scmp.lt.s32.totalorder %s41, 1
    %s43 = scalar_select %p42, %s41, 1
    %s44 = smul.addr %s43, 8
    %s45 = scalar_lea.vmem %s0, %s44
    %s46 = sadd.s32 0, 0
    %s47 = smul.u32 2, %s46
    %s48 = sadd.s32 0, 0
    %s49 = smul.u32 2, %s48
    %p50 = scmp.lt.s32.totalorder %s49, 1
    %s51 = scalar_select %p50, %s49, 1
    %s52 = smul.addr %s51, 8
    %s53 = scalar_lea.vmem %s1, %s52
    %s54 = sadd.s32 0, 0
    %s55 = smul.u32 2, %s54
    %p56 = scmp.eq.s32.totalorder 0, 0
    // Predicated region
    $region10: #{ae.1} parent=1 // pred_check
      %p57 = pneg %p56
    $region11: #{ae.1} parent=1 // pred_check_branch
      %59 = sbr.rel (%p57) target = $region13
    $region12: #{ae.1} parent=1 // pred_region
      %60 = vst [vmem:[#allocation2] sm:$0xff] 0.0
    $region13: #{ae.1} parent=1 // pred_fallthru
      _
    %v61 = vld [vmem:[%s45] sm:$0xff]
    %v62 = vld [vmem:[%s45 + $0x8] sm:$0xff]
    %v63 = vld [vmem:[%s53] sm:$0xff]
    %v64 = vld [vmem:[%s53 + $0x8] sm:$0xff]
    %v65 = vsub.f32 %v61, %v63
    %v66 = vsub.f32 %v62, %v64
    %v67 = vld [vmem:[#allocation2] sm:$0xff]
    %v68 = vadd.f32 %v65, %v66
    %v69 = vadd.f32 %v67, %v68
    %70 = vst [vmem:[#allocation2] sm:$0xff] %v69
    // Predicated region
    $region14: #{ae.1} parent=1 // pred_check
      %p71 = pneg %p56
    $region15: #{ae.1} parent=1 // pred_check_branch
      %73 = sbr.rel (%p71) target = $region17
    $region16: #{ae.1} parent=1 // pred_region
      %v74 = vld [vmem:[#allocation2] sm:$0xff]
      %75 = vadd.xlane.f32.xlu0 %v74
      %v76 = vpop.xlane.xlu0 %75
      %v77 = vrot.slane %v76, 4
      %v78 = vadd.f32 %v76, %v77
      %v79 = vrot.slane %v78, 2
      %v80 = vadd.f32 %v78, %v79
      %v81 = vrot.slane %v80, 1
      %v82 = vadd.f32 %v80, %v81
      %s83 = vtos %v82
      %s84 = sand.u32 2147483647, %s83
      %s85 = smul.f32 %s84, 0.00048828125
      %v86 = vstv %s85
      %87 = vst [vmem:[#allocation3] sm:$0x1] %v86
    $region17: #{ae.1} parent=1 // pred_fallthru
      _
    // Predicated region
    $region18: #{ae.1} parent=1 // pred_check
      _
    $region19: #{ae.1} parent=1 // pred_check_branch
      %89 = sbr.rel (0) target = $region21
    $region20: #{ae.1} parent=1 // pred_region
      %91 = vsyncadd [#allocation4], 0
      %s93 = sshll.u32 [#allocation3], 4
      %s94 = int_to_ptr.vmem [resolvable:$true] %s93
      %s95 = sshll.u32 %s2, 4
      %s96 = int_to_ptr.hbm [resolvable:$true] %s95
      %98 = dma.vmem_to_hbm [thread:$0]  %s94, 16, %s96, [#allocation4]
    $region21: #{ae.1} parent=1 // pred_fallthru
      _
    // Predicated region
    $region22: #{ae.1} parent=1 // pred_check
      _
    $region23: #{ae.1} parent=1 // pred_check_branch
      %100 = sbr.rel (0) target = $region25
    $region24: #{ae.1} parent=1 // pred_region
      %102 = dma.done [#allocation4], 16
    $region25: #{ae.1} parent=1 // pred_fallthru
      _
    %103 = vsyncpa [#allocation4], 1

</llo_original>
